<compile_context>
chip_gen: v7x
topology: tpu7x:2x2x1
jax: 0.10.0
libtpu: 0.0.40
codegen_flags: <defaults>
</compile_context>

<pallas_src>
import functools

import jax
import jax.numpy as jnp
from jax.experimental import pallas as pl
from jax.experimental.pallas import tpu as pltpu


# ---------------------------------------------------------------------------
# Hardware-dependent tuning helpers.
# ---------------------------------------------------------------------------
def _vmem_limit_bytes():
    """Per-generation scoped-VMEM limit (~3/4 of physical per-core VMEM)."""
    try:
        cap = pltpu.get_tpu_info().vmem_capacity_bytes
    except Exception:  # pragma: no cover - conservative fallback
        cap = 64 * 1024 * 1024
    return max(32 * 1024 * 1024, min(int(cap * 3 // 4), 100 * 1024 * 1024))


def _query_tile_target():
    """Query-tile size matched to the MXU width of the current generation."""
    try:
        kind = jax.devices()[0].device_kind.lower()
    except Exception:  # pragma: no cover
        kind = ""
    if ("v6" in kind) or ("v7" in kind):
        return 256          # 256-wide MXUs on v6e / v7x
    return 128              # v5e (and older) 128x128 MXUs


def _pick_tile(n, target):
    """Largest multiple of 8 <= target that divides n, else n (full dim)."""
    if n <= target:
        return n
    t = (target // 8) * 8
    while t >= 8:
        if n % t == 0:
            return t
        t -= 8
    return n


# ---------------------------------------------------------------------------
# Kernel 1: farthest point sampling (one batch element per grid step).
# ---------------------------------------------------------------------------
def fps_kernel(xyz8_ref, newxyz_ref, *, n_valid):
    """xyz8_ref: (1, 3, 8, Nl) with point n at (n // Nl, n % Nl);
    newxyz_ref: (1, P, 3). Padded points (id >= n_valid) start at dist 0 so
    they can never be selected."""
    x = xyz8_ref[0]                                      # (3, 8, Nl)
    s, nl = x.shape[1], x.shape[2]
    p = newxyz_ref.shape[1]
    total = s * nl

    def flat_ids():
        return (jax.lax.broadcasted_iota(jnp.int32, (s, nl), 0) * nl
                + jax.lax.broadcasted_iota(jnp.int32, (s, nl), 1))

    def body(i, carry):
        dist, far = carry                                # (s, nl) f32, (1,1) i32
        ids = flat_ids()
        sel = ids == far                                 # (s, nl)
        # Single masked reduce over the whole (3, s, nl) block -> (3, 1, 1).
        csel = jnp.where(sel[None, :, :], x, 0.0)
        cs = jnp.sum(csel, axis=2, keepdims=True)        # (3, s, 1)
        cs = jnp.sum(cs, axis=1, keepdims=True)          # (3, 1, 1)
        lane3 = jax.lax.broadcasted_iota(jnp.int32, (1, 3), 1)
        cent = jnp.where(lane3 == 0, cs[0],
                         jnp.where(lane3 == 1, cs[1], cs[2]))        # (1, 3)
        newxyz_ref[0, pl.ds(i, 1), :] = cent
        d = ((x[0] - cs[0]) ** 2 + (x[1] - cs[1]) ** 2
             + (x[2] - cs[2]) ** 2)                      # (s, nl)
        dist = jnp.minimum(dist, d)
        maxv = jnp.max(jnp.max(dist, axis=1, keepdims=True),
                       axis=0, keepdims=True)            # (1, 1)
        # argmax with first-occurrence tie-break (matches jnp.argmax).
        far = jnp.min(jnp.min(jnp.where(dist >= maxv, ids, total),
                              axis=1, keepdims=True),
                      axis=0, keepdims=True).astype(jnp.int32)
        return dist, far

    ids0 = flat_ids()
    dist0 = jnp.where(ids0 < n_valid, jnp.float32(1e10), jnp.float32(0.0))
    # TODO(synk): torch seeds FPS with torch.randint; we start at point index 0.
    far0 = jnp.zeros((1, 1), dtype=jnp.int32)
    jax.lax.fori_loop(0, p, body, (dist0, far0))


# ---------------------------------------------------------------------------
# Kernel 2: 1x1 conv + folded BatchNorm + ReLU  ->  bf16 y.
# ---------------------------------------------------------------------------
def conv_bn_relu_kernel(feat_ref, w_ref, scale_ref, shift_ref, y_ref):
    """feat_ref: (1, tn, Cin)  w_ref: (Cin, Coutp)  scale/shift: (1, Coutp)
    y_ref: (1, tn, Coutp) bf16"""
    y = jnp.dot(feat_ref[0], w_ref[...],
                preferred_element_type=jnp.float32)      # (tn, Coutp)
    y = jnp.maximum(y * scale_ref[...] + shift_ref[...], 0.0)
    y_ref[0] = y.astype(y_ref.dtype)


# ---------------------------------------------------------------------------
# Kernel 3: kNN grouping + max/mean pooling over one query tile.
# ---------------------------------------------------------------------------
def group_pool_kernel(newxyz_ref, xyzt_ref, y_ref, out_ref, *, k, pooling):
    """newxyz_ref: (1, tp, 3)  xyzt_ref: (1, 3, N)  y_ref: (1, N, Coutp) bf16
    out_ref: (1, tp, Coutp) f32"""
    q = newxyz_ref[0]                                    # (tp, 3)
    xt = xyzt_ref[0]                                     # (3, N)
    y = y_ref[0]                                         # (N, Coutp) bf16
    tp = q.shape[0]
    n = xt.shape[1]
    coutp = y.shape[1]

    # Pairwise squared distances query tile -> all points (same op order as
    # the reference so nearest-neighbour selection matches exactly).
    d0 = ((q[:, 0:1] - xt[0:1, :]) ** 2 + (q[:, 1:2] - xt[1:2, :]) ** 2
          + (q[:, 2:3] - xt[2:3, :]) ** 2)               # (tp, N)

    def body(_, carry):
        d, acc = carry                                   # (tp,N) f32, (tp,Coutp) f32
        ids = jax.lax.broadcasted_iota(jnp.int32, (tp, n), 1)
        minv = jnp.min(d, axis=1, keepdims=True)
        sel = jnp.min(jnp.where(d <= minv, ids, n), axis=1, keepdims=True)
        m = ids == sel                                   # one-hot nearest column
        g = jnp.dot(m.astype(jnp.bfloat16), y,
                    preferred_element_type=jnp.float32)  # (tp, Coutp)
        d = jnp.where(m, jnp.float32(1e10), d)
        if pooling == "mean":
            acc = acc + g
        else:
            # init 0 is safe: y is post-ReLU (>= 0) so gathered values are >= 0.
            acc = jnp.maximum(acc, g)
        return d, acc

    _, acc = jax.lax.fori_loop(
        0, k, body, (d0, jnp.zeros((tp, coutp), jnp.float32)))
    if pooling == "mean":
        acc = acc * (1.0 / k)
    out_ref[0] = acc.astype(out_ref.dtype)


# ---------------------------------------------------------------------------
# Wrapper.
# ---------------------------------------------------------------------------
def transition_down(xyz, features, w_eff, scale, shift, *, npoint, k,
                    pooling="max"):
    B, N, _ = xyz.shape
    cin = features.shape[-1]
    cout = w_eff.shape[-1]
    vmem_limit = _vmem_limit_bytes()

    # --------------------------- FPS ---------------------------------------
    xyz_t = jnp.transpose(xyz, (0, 2, 1))                # (B, 3, N)
    n_pad = -(-N // 8) * 8
    xyz_t_p = xyz_t if n_pad == N else jnp.pad(
        xyz_t, ((0, 0), (0, 0), (0, n_pad - N)))
    nl = n_pad // 8
    xyz8 = xyz_t_p.reshape(B, 3, 8, nl)                  # full sublane occupancy

    new_xyz = pl.pallas_call(
        functools.partial(fps_kernel, n_valid=N),
        out_shape=jax.ShapeDtypeStruct((B, npoint, 3), jnp.float32),
        grid=(B,),
        in_specs=[pl.BlockSpec((1, 3, 8, nl), lambda b: (b, 0, 0, 0))],
        out_specs=pl.BlockSpec((1, npoint, 3), lambda b: (b, 0, 0)),
        compiler_params=pltpu.CompilerParams(
            dimension_semantics=("parallel",),
            vmem_limit_bytes=vmem_limit),
    )(xyz8)

    # ------------------ 1x1 conv + BN + ReLU (separate call) ---------------
    coutp = -(-cout // 128) * 128                        # lane-dense outputs
    if coutp != cout:
        w_p = jnp.pad(w_eff, ((0, 0), (0, coutp - cout)))
        scale_p = jnp.pad(scale, (0, coutp - cout))
        shift_p = jnp.pad(shift, (0, coutp - cout))
    else:
        w_p, scale_p, shift_p = w_eff, scale, shift
    scale2d = scale_p.reshape(1, coutp)
    shift2d = shift_p.reshape(1, coutp)

    tn = _pick_tile(N, 512)
    y = pl.pallas_call(
        conv_bn_relu_kernel,
        out_shape=jax.ShapeDtypeStruct((B, N, coutp), jnp.bfloat16),
        grid=(B, N // tn),
        in_specs=[
            pl.BlockSpec((1, tn, cin), lambda b, n: (b, n, 0)),
            pl.BlockSpec((cin, coutp), lambda b, n: (0, 0)),
            pl.BlockSpec((1, coutp), lambda b, n: (0, 0)),
            pl.BlockSpec((1, coutp), lambda b, n: (0, 0)),
        ],
        out_specs=pl.BlockSpec((1, tn, coutp), lambda b, n: (b, n, 0)),
        compiler_params=pltpu.CompilerParams(
            dimension_semantics=("parallel", "parallel"),
            vmem_limit_bytes=vmem_limit),
    )(features, w_p, scale2d, shift2d)

    # ---------------------- kNN grouping + pooling -------------------------
    tp_target = _query_tile_target()                     # 128 (v5e) / 256 (v6e/v7x)
    if npoint <= tp_target:
        tp = npoint
        p_pad = npoint
        new_xyz_q = new_xyz
    else:
        tp = tp_target
        p_pad = -(-npoint // tp) * tp
        new_xyz_q = new_xyz if p_pad == npoint else jnp.pad(
            new_xyz, ((0, 0), (0, p_pad - npoint), (0, 0)), mode="edge")

    new_features = pl.pallas_call(
        functools.partial(group_pool_kernel, k=k, pooling=pooling),
        out_shape=jax.ShapeDtypeStruct((B, p_pad, coutp), jnp.float32),
        grid=(B, p_pad // tp),
        in_specs=[
            pl.BlockSpec((1, tp, 3), lambda b, p: (b, p, 0)),
            pl.BlockSpec((1, 3, N), lambda b, p: (b, 0, 0)),
            pl.BlockSpec((1, N, coutp), lambda b, p: (b, 0, 0)),
        ],
        out_specs=pl.BlockSpec((1, tp, coutp), lambda b, p: (b, p, 0)),
        compiler_params=pltpu.CompilerParams(
            dimension_semantics=("parallel", "parallel"),
            vmem_limit_bytes=vmem_limit),
    )(new_xyz_q, xyz_t, y)

    if p_pad != npoint:
        new_features = new_features[:, :npoint]
    if coutp != cout:
        new_features = new_features[:, :, :cout]
    return new_xyz, new_features


# ---------------------------------------------------------------------------
# Pure-JAX reference (same semantics: FPS start index = 0, eval-mode BN).
# ---------------------------------------------------------------------------
def reference(xyz, features, w_eff, scale, shift, npoint, k, pooling="max"):
    B, N, _ = xyz.shape
    new_xyz_list = []
    for b in range(B):
        pts = xyz[b]
        dist = jnp.full((N,), 1e10, jnp.float32)
        far = jnp.array(0, jnp.int32)
        cents = []
        for _ in range(npoint):
            cents.append(far)
            c = pts[far]
            d = jnp.sum((pts - c) ** 2, axis=-1)
            dist = jnp.minimum(dist, d)
            far = jnp.argmax(dist).astype(jnp.int32)
        new_xyz_list.append(pts[jnp.stack(cents)])
    new_xyz = jnp.stack(new_xyz_list)                    # (B, P, 3)

    dists = jnp.sum((new_xyz[:, :, None, :] - xyz[:, None, :, :]) ** 2, axis=-1)
    idx = jnp.argsort(dists, axis=-1)[:, :, :k]          # (B, P, k)

    y = jnp.einsum("bnc,co->bno", features, w_eff,
                   precision=jax.lax.Precision.HIGHEST)
    y = jnp.maximum(y * scale[None, None, :] + shift[None, None, :], 0.0)

    outs = []
    for b in range(B):
        g = y[b][idx[b]]                                 # (P, k, Cout)
        outs.append(jnp.mean(g, axis=1) if pooling == "mean"
                    else jnp.max(g, axis=1))
    return new_xyz, jnp.stack(outs)


if __name__ == "__main__":
    B, N, Cin, Cout = 2, 16, 8, 16
    npoint, k = 8, 4

    key = jax.random.PRNGKey(0)
    k1, k2, k3, k4 = jax.random.split(key, 4)
    xyz = jax.random.normal(k1, (B, N, 3), dtype=jnp.float32)
    features = jax.random.normal(k2, (B, N, Cin), dtype=jnp.float32)

    # Deterministic parameters: Conv1d(Cin, Cout, 1) weight/bias + BatchNorm1d.
    conv_w = 0.1 * jax.random.normal(k3, (Cout, Cin), dtype=jnp.float32)
    conv_b = 0.05 * jax.random.normal(k4, (Cout,), dtype=jnp.float32)
    gamma = jnp.ones((Cout,), jnp.float32)
    beta = jnp.zeros((Cout,), jnp.float32)
    running_mean = jnp.zeros((Cout,), jnp.float32)
    running_var = jnp.ones((Cout,), jnp.float32)
    eps = 1e-5
    # TODO(synk): training-mode BatchNorm (batch statistics) is not reproduced;
    # eval-mode running stats are folded into a per-channel scale/shift.
    s = gamma / jnp.sqrt(running_var + eps)
    w_eff = conv_w.T                                     # (Cin, Cout)
    scale = s
    shift = (conv_b - running_mean) * s + beta

    for pooling in ("max", "mean"):
        new_xyz, new_feat = transition_down(
            xyz, features, w_eff, scale, shift,
            npoint=npoint, k=k, pooling=pooling)
        jax.block_until_ready((new_xyz, new_feat))

        ref_xyz, ref_feat = reference(xyz, features, w_eff, scale, shift,
                                      npoint, k, pooling=pooling)
        assert new_xyz.shape == (B, npoint, 3)
        assert new_feat.shape == (B, npoint, Cout)
        assert jnp.allclose(new_xyz, ref_xyz, atol=1e-5, rtol=1e-5), (
            f"new_xyz mismatch ({pooling})")
        # Conv + gather matmuls run at default (single-pass bf16) MXU
        # precision and y is stored in bf16, so features get bf16 tolerance.
        assert jnp.allclose(new_feat, ref_feat, atol=2e-2, rtol=2e-2), (
            f"new_features mismatch ({pooling})")

    print("KERNEL_OK")
</pallas_src>

<mosaic_0001>
module attributes {stable_mosaic.version = 11 : i64} {
  func.func @fps_kernel(%arg0: i32, %arg1: memref<1x3x8x2xf32, #tpu.memory_space<vmem>>, %arg2: memref<1x8x3xf32, #tpu.memory_space<vmem>>) attributes {dimension_semantics = [#tpu.dimension_semantics<parallel>], iteration_bounds = array<i64: 2>, scalar_prefetch = 0 : i64, scratch_operands = 0 : i64, tpu.core_type = #tpu.core_type<tc>, window_params = [{transform_indices = @transform_0, window_bounds = array<i64: 1, 3, 8, 2>}, {transform_indices = @transform_1, window_bounds = array<i64: 1, 8, 3>}]} {
    %c0 = arith.constant 0 : index
    %c0_0 = arith.constant 0 : index
    %c0_1 = arith.constant 0 : index
    %c0_2 = arith.constant 0 : index
    %0 = vector.load %arg1[%c0, %c0_0, %c0_1, %c0_2] : memref<1x3x8x2xf32, #tpu.memory_space<vmem>>, vector<1x3x8x2xf32>
    %1 = vector.shape_cast %0 : vector<1x3x8x2xf32> to vector<3x8x2xf32>
    %2 = tpu.iota {dimensions = array<i32: 0>} : vector<8x2xi32>
    %c2_i32 = arith.constant 2 : i32
    %3 = vector.broadcast %c2_i32 : i32 to vector<8x2xi32>
    %4 = arith.muli %2, %3 : vector<8x2xi32>
    %5 = tpu.iota {dimensions = array<i32: 1>} : vector<8x2xi32>
    %6 = arith.addi %4, %5 : vector<8x2xi32>
    %c16_i32 = arith.constant 16 : i32
    %7 = vector.broadcast %c16_i32 : i32 to vector<8x2xi32>
    %8 = arith.cmpi slt, %6, %7 : vector<8x2xi32>
    %cst = arith.constant 1.000000e+10 : f32
    %cst_3 = arith.constant 0.000000e+00 : f32
    %9 = vector.broadcast %cst : f32 to vector<8x2xf32>
    %10 = vector.broadcast %cst_3 : f32 to vector<8x2xf32>
    %11 = arith.select %8, %9, %10 : vector<8x2xi1>, vector<8x2xf32>
    %c0_i32 = arith.constant 0 : i32
    %12 = vector.broadcast %c0_i32 : i32 to vector<1x1xi32>
    %c0_i32_4 = arith.constant 0 : i32
    %c8_i32 = arith.constant 8 : i32
    %13 = arith.addi %c0_i32_4, %c8_i32 : i32
    %c1_i32 = arith.constant 1 : i32
    %14:2 = scf.for %arg3 = %c0_i32_4 to %13 step %c1_i32 iter_args(%arg4 = %11, %arg5 = %12) -> (vector<8x2xf32>, vector<1x1xi32>)  : i32 {
      %15 = tpu.iota {dimensions = array<i32: 0>} : vector<8x2xi32>
      %c2_i32_6 = arith.constant 2 : i32
      %16 = vector.broadcast %c2_i32_6 : i32 to vector<8x2xi32>
      %17 = arith.muli %15, %16 : vector<8x2xi32>
      %18 = tpu.iota {dimensions = array<i32: 1>} : vector<8x2xi32>
      %19 = arith.addi %17, %18 : vector<8x2xi32>
      %20 = vector.broadcast %arg5 : vector<1x1xi32> to vector<8x2xi32>
      %21 = arith.cmpi eq, %19, %20 : vector<8x2xi32>
      %22 = vector.shape_cast %21 : vector<8x2xi1> to vector<1x8x2xi1>
      %cst_7 = arith.constant 0.000000e+00 : f32
      %23 = vector.shape_cast %22 : vector<1x8x2xi1> to vector<1x8x2xi1>
      %24 = vector.broadcast %23 : vector<1x8x2xi1> to vector<3x8x2xi1>
      %25 = vector.broadcast %cst_7 : f32 to vector<3x8x2xf32>
      %26 = arith.select %24, %1, %25 : vector<3x8x2xi1>, vector<3x8x2xf32>
      %cst_8 = arith.constant dense<0.000000e+00> : vector<3x8xf32>
      %27 = vector.multi_reduction <add>, %26, %cst_8 [2] : vector<3x8x2xf32> to vector<3x8xf32>
      %28 = vector.shape_cast %27 : vector<3x8xf32> to vector<3x8x1xf32>
      %cst_9 = arith.constant dense<0.000000e+00> : vector<3x1xf32>
      %29 = vector.multi_reduction <add>, %28, %cst_9 [1] : vector<3x8x1xf32> to vector<3x1xf32>
      %30 = vector.shape_cast %29 : vector<3x1xf32> to vector<3x1x1xf32>
      %31 = tpu.iota {dimensions = array<i32: 1>} : vector<1x3xi32>
      %c0_i32_10 = arith.constant 0 : i32
      %32 = vector.broadcast %c0_i32_10 : i32 to vector<1x3xi32>
      %33 = arith.cmpi eq, %31, %32 : vector<1x3xi32>
      %34 = vector.extract_strided_slice %30 {offsets = [0, 0, 0], sizes = [1, 1, 1], strides = [1, 1, 1]} : vector<3x1x1xf32> to vector<1x1x1xf32>
      %35 = vector.shape_cast %34 : vector<1x1x1xf32> to vector<1x1xf32>
      %c1_i32_11 = arith.constant 1 : i32
      %36 = vector.broadcast %c1_i32_11 : i32 to vector<1x3xi32>
      %37 = arith.cmpi eq, %31, %36 : vector<1x3xi32>
      %38 = vector.extract_strided_slice %30 {offsets = [1, 0, 0], sizes = [1, 1, 1], strides = [1, 1, 1]} : vector<3x1x1xf32> to vector<1x1x1xf32>
      %39 = vector.shape_cast %38 : vector<1x1x1xf32> to vector<1x1xf32>
      %40 = vector.extract_strided_slice %30 {offsets = [2, 0, 0], sizes = [1, 1, 1], strides = [1, 1, 1]} : vector<3x1x1xf32> to vector<1x1x1xf32>
      %41 = vector.shape_cast %40 : vector<1x1x1xf32> to vector<1x1xf32>
      %42 = vector.shape_cast %39 : vector<1x1xf32> to vector<1x1xf32>
      %43 = vector.broadcast %42 : vector<1x1xf32> to vector<1x3xf32>
      %44 = vector.shape_cast %41 : vector<1x1xf32> to vector<1x1xf32>
      %45 = vector.broadcast %44 : vector<1x1xf32> to vector<1x3xf32>
      %46 = arith.select %37, %43, %45 : vector<1x3xi1>, vector<1x3xf32>
      %47 = vector.shape_cast %35 : vector<1x1xf32> to vector<1x1xf32>
      %48 = vector.broadcast %47 : vector<1x1xf32> to vector<1x3xf32>
      %49 = arith.select %33, %48, %46 : vector<1x3xi1>, vector<1x3xf32>
      %c0_12 = arith.constant 0 : index
      %50 = arith.index_cast %arg3 : i32 to index
      %c0_13 = arith.constant 0 : index
      %51 = vector.load %arg2[%c0_12, %50, %c0_13] : memref<1x8x3xf32, #tpu.memory_space<vmem>>, vector<1x1x3xf32>
      %52 = vector.shape_cast %51 : vector<1x1x3xf32> to vector<1x3xf32>
      %53 = vector.shape_cast %49 : vector<1x3xf32> to vector<1x1x3xf32>
      tpu.vector_store %arg2[%c0_12, %50, %c0_13], %53 {strides = array<i32>} : memref<1x8x3xf32, #tpu.memory_space<vmem>>, vector<1x1x3xf32>,
      %54 = vector.extract_strided_slice %1 {offsets = [0, 0, 0], sizes = [1, 8, 2], strides = [1, 1, 1]} : vector<3x8x2xf32> to vector<1x8x2xf32>
      %55 = vector.shape_cast %54 : vector<1x8x2xf32> to vector<8x2xf32>
      %56 = vector.extract_strided_slice %30 {offsets = [0, 0, 0], sizes = [1, 1, 1], strides = [1, 1, 1]} : vector<3x1x1xf32> to vector<1x1x1xf32>
      %57 = vector.shape_cast %56 : vector<1x1x1xf32> to vector<1x1xf32>
      %58 = vector.broadcast %57 : vector<1x1xf32> to vector<8x2xf32>
      %59 = arith.subf %55, %58 : vector<8x2xf32>
      %60 = arith.mulf %59, %59 : vector<8x2xf32>
      %61 = vector.extract_strided_slice %1 {offsets = [1, 0, 0], sizes = [1, 8, 2], strides = [1, 1, 1]} : vector<3x8x2xf32> to vector<1x8x2xf32>
      %62 = vector.shape_cast %61 : vector<1x8x2xf32> to vector<8x2xf32>
      %63 = vector.extract_strided_slice %30 {offsets = [1, 0, 0], sizes = [1, 1, 1], strides = [1, 1, 1]} : vector<3x1x1xf32> to vector<1x1x1xf32>
      %64 = vector.shape_cast %63 : vector<1x1x1xf32> to vector<1x1xf32>
      %65 = vector.broadcast %64 : vector<1x1xf32> to vector<8x2xf32>
      %66 = arith.subf %62, %65 : vector<8x2xf32>
      %67 = arith.mulf %66, %66 : vector<8x2xf32>
      %68 = arith.addf %60, %67 : vector<8x2xf32>
      %69 = vector.extract_strided_slice %1 {offsets = [2, 0, 0], sizes = [1, 8, 2], strides = [1, 1, 1]} : vector<3x8x2xf32> to vector<1x8x2xf32>
      %70 = vector.shape_cast %69 : vector<1x8x2xf32> to vector<8x2xf32>
      %71 = vector.extract_strided_slice %30 {offsets = [2, 0, 0], sizes = [1, 1, 1], strides = [1, 1, 1]} : vector<3x1x1xf32> to vector<1x1x1xf32>
      %72 = vector.shape_cast %71 : vector<1x1x1xf32> to vector<1x1xf32>
      %73 = vector.broadcast %72 : vector<1x1xf32> to vector<8x2xf32>
      %74 = arith.subf %70, %73 : vector<8x2xf32>
      %75 = arith.mulf %74, %74 : vector<8x2xf32>
      %76 = arith.addf %68, %75 : vector<8x2xf32>
      %77 = arith.minimumf %arg4, %76 : vector<8x2xf32>
      %cst_14 = arith.constant dense<0xFF800000> : vector<8xf32>
      %78 = vector.multi_reduction <maximumf>, %77, %cst_14 [1] : vector<8x2xf32> to vector<8xf32>
      %79 = vector.shape_cast %78 : vector<8xf32> to vector<8x1xf32>
      %cst_15 = arith.constant dense<0xFF800000> : vector<1xf32>
      %80 = vector.multi_reduction <maximumf>, %79, %cst_15 [0] : vector<8x1xf32> to vector<1xf32>
      %81 = vector.shape_cast %80 : vector<1xf32> to vector<1x1xf32>
      %82 = vector.broadcast %81 : vector<1x1xf32> to vector<8x2xf32>
      %83 = arith.cmpf oge, %77, %82 : vector<8x2xf32>
      %c16_i32_16 = arith.constant 16 : i32
      %84 = vector.broadcast %c16_i32_16 : i32 to vector<8x2xi32>
      %85 = arith.select %83, %19, %84 : vector<8x2xi1>, vector<8x2xi32>
      %cst_17 = arith.constant dense<2147483647> : vector<8xi32>
      %86 = vector.multi_reduction <minsi>, %85, %cst_17 [1] : vector<8x2xi32> to vector<8xi32>
      %87 = vector.shape_cast %86 : vector<8xi32> to vector<8x1xi32>
      %cst_18 = arith.constant dense<2147483647> : vector<1xi32>
      %88 = vector.multi_reduction <minsi>, %87, %cst_18 [0] : vector<8x1xi32> to vector<1xi32>
      %89 = vector.shape_cast %88 : vector<1xi32> to vector<1x1xi32>
      scf.yield %77, %89 : vector<8x2xf32>, vector<1x1xi32>
    }
    %c8_i32_5 = arith.constant 8 : i32
    return
  }
  func.func @transform_0(%arg0: i32) -> (i32, i32, i32, i32) {
    %c0_i32 = arith.constant 0 : i32
    %c0_i32_0 = arith.constant 0 : i32
    %c0_i32_1 = arith.constant 0 : i32
    %c0_i32_2 = arith.constant 0 : i32
    return %arg0, %c0_i32, %c0_i32_0, %c0_i32_1 : i32, i32, i32, i32
  }
  func.func @transform_1(%arg0: i32) -> (i32, i32, i32) {
    %c0_i32 = arith.constant 0 : i32
    %c0_i32_0 = arith.constant 0 : i32
    %c0_i32_1 = arith.constant 0 : i32
    return %arg0, %c0_i32, %c0_i32_0 : i32, i32, i32
  }
}

</mosaic_0001>

<llo_original>
// kernel: tpu_custom_call.1
$region0: #{tpu_custom_call.1}
  #allocation0 [shape = 'u32[]', space=smem, size = 0x4, offset = 0x4, fixed_abs, tag = 'smem constant byte address 0x4 - core index']
  #allocation1 [shape = 'u32[144,128]{1,0:T(1,128)}', space=vmem, size = 0x12000, scoped, tag = 'internal scratch']
  %s0 = inlined_call_operand.vmem [shape: f32[2,3,8,2], index: 0, kind: input, shape index: {}]
  %s1 = inlined_call_operand.vmem [shape: f32[2,8,3], index: 1, kind: output, shape index: {}]
  %s2 = sld [smem:[#allocation0]]
  $region44: #{tpu_custom_call.1} parent=0
    _
  %s4 = ssub.s32 1, %s2
  %s5 = scalar_select 0, %s4, %s2
  loop: start=0, step=1, limit=4
  $region2: #{tpu_custom_call.1} parent=0 // loop_pre_header
    _
  $region3: #{tpu_custom_call.1} parent=0 // loop_header
    %s7 = sphi 0, %s11
    %p8 = scmp.ge.s32.totalorder %s7, 4
    %s17 = sphi 0, %s19
    %s20 = sphi 0, %s17
    %s21 = sphi 0, %s20
    %s37 = sphi 0, %s21
    %s43 = sphi 0, %s45
    %s46 = sphi 0, %s43
    %s47 = sphi 0, %s46
    %s63 = sphi 0, %s47
  $region4: #{tpu_custom_call.1} parent=0 // loop_header_branch
    %10 = sbr.rel (%p8) target = $region8
  $region5: #{tpu_custom_call.1} parent=0 // loop_body
    %s12 = ssub.s32 %s7, 1
    %s13 = ssub.s32 %s7, 2
    %s14 = sadd.s32 %s7, 1
    %s15 = ssub.s32 %s7, %s14
    %p16 = scmp.eq.s32.totalorder %s15, 0
    %s18 = sadd.s32 %s17, 1
    %s19 = scalar_select %p16, %s17, %s18
    %p22 = pneg %p16
    %p23 = scmp.eq.s32.totalorder %s7, 1
    %p24 = por %p22, %p23
    %p25 = scmp.ne.s32.totalorder %s17, %s20
    %p26 = scmp.eq.s32.totalorder %s7, 0
    %p27 = por %p25, %p26
    %p28 = scmp.ne.s32.totalorder %s17, %s20
    %p29 = scmp.eq.s32.totalorder %s12, 1
    %p30 = por %p28, %p29
    %p31 = scmp.ne.s32.totalorder %s20, %s21
    %p32 = scmp.eq.s32.totalorder %s12, 0
    %p33 = por %p31, %p32
    %p34 = scmp.ne.s32.totalorder %s20, %s21
    %p35 = scmp.eq.s32.totalorder %s13, 1
    %p36 = por %p34, %p35
    %p38 = scmp.ne.s32.totalorder %s21, %s37
    %p39 = scmp.eq.s32.totalorder %s13, 0
    %p40 = por %p38, %p39
    %s41 = ssub.s32 %s7, %s14
    %p42 = scmp.eq.s32.totalorder %s41, 0
    %s44 = sadd.s32 %s43, 1
    %s45 = scalar_select %p42, %s43, %s44
    %p48 = pneg %p42
    %p49 = scmp.eq.s32.totalorder %s7, 1
    %p50 = por %p48, %p49
    %p51 = scmp.ne.s32.totalorder %s43, %s46
    %p52 = scmp.eq.s32.totalorder %s7, 0
    %p53 = por %p51, %p52
    %p54 = scmp.ne.s32.totalorder %s43, %s46
    %p55 = scmp.eq.s32.totalorder %s12, 1
    %p56 = por %p54, %p55
    %p57 = scmp.ne.s32.totalorder %s46, %s47
    %p58 = scmp.eq.s32.totalorder %s12, 0
    %p59 = por %p57, %p58
    %p60 = scmp.ne.s32.totalorder %s46, %s47
    %p61 = scmp.eq.s32.totalorder %s13, 1
    %p62 = por %p60, %p61
    %p64 = scmp.ne.s32.totalorder %s47, %s63
    %p65 = scmp.eq.s32.totalorder %s13, 0
    %p66 = por %p64, %p65
    %p67 = scmp.le.s32.totalorder 1, %s7
    %p68 = scmp.lt.s32.totalorder %s7, 3
    %p69 = pnand %p67, %p68
    %p70 = pneg %p69
    // Predicated region
    $region9: #{tpu_custom_call.1} parent=5 // pred_check
      _
    $region10: #{tpu_custom_call.1} parent=5 // pred_check_branch
      %72 = sbr.rel (%p69) target = $region12
    $region11: #{tpu_custom_call.1} parent=5 // pred_region
      %s73 = ssub.s32 %s7, 1
    $region12: #{tpu_custom_call.1} parent=5 // pred_fallthru
      _
    %p74 = scmp.lt.s32.totalorder %s7, 2
    // Predicated region
    $region13: #{tpu_custom_call.1} parent=5 // pred_check
      %p75 = pneg %p74
    $region14: #{tpu_custom_call.1} parent=5 // pred_check_branch
      %77 = sbr.rel (%p75) target = $region16
    $region15: #{tpu_custom_call.1} parent=5 // pred_region
      // Predicated region
      $region17: #{tpu_custom_call.1} parent=15 // pred_check
        %p78 = pneg %p27
      $region18: #{tpu_custom_call.1} parent=15 // pred_check_branch
        %80 = sbr.rel (%p78) target = $region20
      $region19: #{tpu_custom_call.1} parent=15 // pred_region
        %p81 = scmp.lt.s32.totalorder %s7, 1
        %s82 = scalar_select %p81, %s7, 1
        %s83 = smul.addr %s82, 3
        %s84 = smul.addr %s83, 8
        %s85 = scalar_lea.vmem %s0, %s84
      $region20: #{tpu_custom_call.1} parent=15 // pred_fallthru
        _
    $region16: #{tpu_custom_call.1} parent=5 // pred_fallthru
      _
    %p86 = scmp.le.s32.totalorder 1, %s7
    %p87 = scmp.lt.s32.totalorder %s7, 3
    %p88 = pnand %p86, %p87
    %p89 = pneg %p88
    // Predicated region
    $region21: #{tpu_custom_call.1} parent=5 // pred_check
      _
    $region22: #{tpu_custom_call.1} parent=5 // pred_check_branch
      %91 = sbr.rel (%p88) target = $region24
    $region23: #{tpu_custom_call.1} parent=5 // pred_region
      %s92 = ssub.s32 %s7, 1
      %p93 = scmp.lt.s32.totalorder %s12, 1
      %s94 = scalar_select %p93, %s12, 1
      %s95 = smul.addr %s94, 3
      %s96 = smul.addr %s95, 8
      %s97 = scalar_lea.vmem %s0, %s96
      %p98 = pneg %p33
      %p99 = pneg %p30
      %p100 = pneg %p59
      %p101 = pneg %p56
      %p102 = scmp.lt.s32.totalorder %s12, 1
      %s103 = scalar_select %p102, %s12, 1
      %s104 = smul.addr %s103, 8
      %s105 = scalar_lea.vmem %s1, %s104
      %p106 = scmp.lt.s32.totalorder %s12, 1
      %s107 = scalar_select %p106, %s12, 1
      %s108 = smul.addr %s107, 3
      %s109 = smul.addr %s108, 8
      %s110 = scalar_lea.vmem %s0, %s109
      %p111 = scmp.lt.s32.totalorder %s12, 1
      %s112 = scalar_select %p111, %s12, 1
      %s113 = smul.addr %s112, 8
      %s114 = scalar_lea.vmem %s1, %s113
      %v115 = vld [vmem:[%s110] sm:$0xff]
      %v116 = vld [vmem:[%s110 + $0x8] sm:$0xff]
      %v117 = vld [vmem:[%s110 + $0x10] sm:$0xff]
      %v118 = vlaneseq
      %v119 = vshrl.u32 %v118, 7
      %v120 = vmul.u32 %v119, 2
      %v121 = vlaneseq
      %v122 = vand.u32 %v121, 127
      %v123 = vadd.s32 %v120, %v122
      %vm124 = vcmp.lt.s32.totalorder %v123, 16
      %v125 = vsel %vm124, 1e+10, 0.0
      loop: start=0, step=1, limit=8
      $region25: #{tpu_custom_call.1} parent=23 // loop_pre_header
        _
      $region26: #{tpu_custom_call.1} parent=23 // loop_header
        %s127 = sphi 0, %s131
        %p128 = scmp.ge.s32.totalorder %s127, 8
        %v132 = vphi %v125, %v183
        %v133 = vphi 0, %v218
      $region27: #{tpu_custom_call.1} parent=23 // loop_header_branch
        %130 = sbr.rel (%p128) target = $region31
      $region28: #{tpu_custom_call.1} parent=23 // loop_body
        %vm134 = vcmp.eq.s32.totalorder %v123, %v133
        %v135 = vsel %vm134, 1, 0
        %vm136 = vcmp.eq.s32.totalorder %v135, 1
        %v137 = vsel %vm136, %v115, 0.0
        %v138 = vsel %vm136, %v116, 0.0
        %v139 = vsel %vm136, %v117, 0.0
        %vm140 = vcmask 15360
        %v141 = vsel %vm140, %v137, 0.0
        %142 = vadd.xlane.f32.xlu0 %v141
        %v143 = vpop.xlane.xlu0 %142
        %v144 = vsel %vm140, %v138, 0.0
        %145 = vadd.xlane.f32.xlu0 %v144
        %v146 = vpop.xlane.xlu0 %145
        %v147 = vsel %vm140, %v139, 0.0
        %148 = vadd.xlane.f32.xlu0 %v147
        %v149 = vpop.xlane.xlu0 %148
        %v150 = vrot.slane %v143, 4
        %v151 = vadd.f32 %v143, %v150
        %v152 = vrot.slane %v151, 2
        %v153 = vadd.f32 %v151, %v152
        %v154 = vrot.slane %v153, 1
        %v155 = vadd.f32 %v153, %v154
        %v156 = vrot.slane %v146, 4
        %v157 = vadd.f32 %v146, %v156
        %v158 = vrot.slane %v157, 2
        %v159 = vadd.f32 %v157, %v158
        %v160 = vrot.slane %v159, 1
        %v161 = vadd.f32 %v159, %v160
        %v162 = vrot.slane %v149, 4
        %v163 = vadd.f32 %v149, %v162
        %v164 = vrot.slane %v163, 2
        %v165 = vadd.f32 %v163, %v164
        %v166 = vrot.slane %v165, 1
        %v167 = vadd.f32 %v165, %v166
        %vm168 = vcmp.eq.s32.totalorder %v122, 0
        %vm169 = vcmp.eq.s32.totalorder %v122, 1
        %v170 = vsel %vm169, %v161, %v167
        %v171 = vsel %vm168, %v155, %v170
        %s172 = scalar_lea.vmem %s114, %s127
        %vm173 = vcmask 16384
        %174 = vst.msk [vmem:[%s172] sm:$0x1] %vm173, %v171
        %v175 = vsub.f32 %v115, %v155
        %v176 = vmul.f32 %v175, %v175
        %v177 = vsub.f32 %v116, %v161
        %v178 = vmul.f32 %v177, %v177
        %v179 = vadd.f32 %v176, %v178
        %v180 = vsub.f32 %v117, %v167
        %v181 = vmul.f32 %v180, %v180
        %v182 = vadd.f32 %v179, %v181
        %v183 = vmin.f32 %v132, %v182
        %v184 = vsel %vm140, %v183, -inf
        %185 = vmax.xlane.f32.xlu0 %v184
        %v186 = vpop.xlane.xlu0 %185
        %v187 = vrot.slane %v186, 4
        %v188 = vmax.f32 %v186, %v187
        %v189 = vrot.slane %v188, 2
        %v190 = vmax.f32 %v188, %v189
        %v191 = vrot.slane %v190, 1
        %v192 = vmax.f32 %v190, %v191
        %vm193 = vcmp.ge.f32.partialorder %v183, %v192
        %v194 = vsel %vm193, %v123, 16
        %v195 = vsel %vm140, %v194, 2147483647
        %v196 = vand.u32 %v195, 65535
        %v197 = vshra.s32 %v195, 16
        %v198 = vcvt.s32.f32 %v196
        %v199 = vcvt.s32.f32 %v197
        %200 = vmin.xlane.f32.xlu0 %v199
        %v201 = vpop.xlane.xlu0 %200
        %vm202 = vcmp.eq.f32.partialorder %v199, %v201
        %v203 = vsel %vm202, %v198, inf
        %204 = vmin.xlane.f32.xlu0 %v203
        %v205 = vpop.xlane.xlu0 %204
        %v206 = vcvt.f32.s32 %v205
        %v207 = vcvt.f32.s32 %v201
        %v208 = vshll.u32 %v207, 16
        %v209 = vadd.s32 %v208, %v206
        %v210 = vrot.slane %v209, 4
        %vm211 = vcmp.lt.s32.totalorder %v209, %v210
        %v212 = vsel %vm211, %v209, %v210
        %v213 = vrot.slane %v212, 2
        %vm214 = vcmp.lt.s32.totalorder %v212, %v213
        %v215 = vsel %vm214, %v212, %v213
        %v216 = vrot.slane %v215, 1
        %vm217 = vcmp.lt.s32.totalorder %v215, %v216
        %v218 = vsel %vm217, %v215, %v216
      $region29: #{tpu_custom_call.1} parent=23 // loop_footer
        %s131 = sadd.s32 1, %s127
      $region30: #{tpu_custom_call.1} parent=23 // loop_footer_branch
        %126 = sbr.rel target = $region26
      $region31: #{tpu_custom_call.1} parent=23 // loop_exit
        _
      %p219 = scmp.lt.s32.totalorder %s12, 1
      %s220 = scalar_select %p219, %s12, 1
      %s221 = smul.addr %s220, 8
      %s222 = scalar_lea.vmem %s1, %s221
      // Predicated region
      $region32: #{tpu_custom_call.1} parent=23 // pred_check
        %p223 = pneg %p56
      $region33: #{tpu_custom_call.1} parent=23 // pred_check_branch
        %225 = sbr.rel (%p223) target = $region35
      $region34: #{tpu_custom_call.1} parent=23 // pred_region
        _
      $region35: #{tpu_custom_call.1} parent=23 // pred_fallthru
        _
    $region24: #{tpu_custom_call.1} parent=5 // pred_fallthru
      _
    %p226 = scmp.le.s32.totalorder 2, %s7
    // Predicated region
    $region36: #{tpu_custom_call.1} parent=5 // pred_check
      %p227 = pneg %p226
    $region37: #{tpu_custom_call.1} parent=5 // pred_check_branch
      %229 = sbr.rel (%p227) target = $region39
    $region38: #{tpu_custom_call.1} parent=5 // pred_region
      %s230 = ssub.s32 %s7, 2
      // Predicated region
      $region40: #{tpu_custom_call.1} parent=38 // pred_check
        %p231 = pneg %p62
      $region41: #{tpu_custom_call.1} parent=38 // pred_check_branch
        %233 = sbr.rel (%p231) target = $region43
      $region42: #{tpu_custom_call.1} parent=38 // pred_region
        %p234 = scmp.lt.s32.totalorder %s13, 1
        %s235 = scalar_select %p234, %s13, 1
        %s236 = smul.addr %s235, 8
        %s237 = scalar_lea.vmem %s1, %s236
      $region43: #{tpu_custom_call.1} parent=38 // pred_fallthru
        _
    $region39: #{tpu_custom_call.1} parent=5 // pred_fallthru
      _
  $region6: #{tpu_custom_call.1} parent=0 // loop_footer
    %s11 = sadd.s32 1, %s7
  $region7: #{tpu_custom_call.1} parent=0 // loop_footer_branch
    %6 = sbr.rel target = $region3
  $region8: #{tpu_custom_call.1} parent=0 // loop_exit
    _

</llo_original>
